<compile_context>
chip_gen: v7x
topology: tpu7x:2x2x1
jax: 0.10.0
libtpu: 0.0.40
codegen_flags: <defaults>
</compile_context>

<pallas_src>
import jax
import jax.numpy as jnp
from jax.experimental import pallas as pl
from jax.experimental.pallas import tpu as pltpu

EPS = 1e-5
_TILE_BUDGET_BYTES = 2 * 1024 * 1024      # per-block VMEM target
_VMEM_LIMIT_BYTES = 32 * 1024 * 1024      # safe on v5e/v6e/v7x


def _choose_tiles(n, c, hw, itemsize=4, budget=_TILE_BUDGET_BYTES):
    """Pick (n_blk, hw_blk): lane-dense (multiple of 128 or full extent),
    exact divisors of the array dims, block bytes <= budget."""
    if hw % 128 == 0:
        k = hw // 128
        best = 1
        for d in range(1, k + 1):
            if k % d == 0 and (128 * d) * c * itemsize <= budget:
                best = d
        hw_blk = 128 * best
    else:
        hw_blk = hw  # full extent satisfies the (8,128) rule
    n_blk = 1
    for d in range(1, n + 1):
        if n % d == 0 and d * c * hw_blk * itemsize <= budget:
            n_blk = d
    return n_blk, hw_blk


def bn_stats_kernel(x_ref, stats_ref):
    """Pass 1: accumulate per-channel sum / sumsq.

    x_ref:     (n_blk, C, hw_blk)    stats_ref: (1, 2, C)  (per-N-tile partial)
    """
    j = pl.program_id(1)

    @pl.when(j == 0)
    def _():
        stats_ref[...] = jnp.zeros_like(stats_ref)

    x = x_ref[...].astype(jnp.float32)
    s = jnp.sum(x, axis=(0, 2))          # (C,)
    sq = jnp.sum(x * x, axis=(0, 2))     # (C,)
    stats_ref[0, 0, :] += s
    stats_ref[0, 1, :] += sq


def bn_prelu_apply_kernel(x_ref, p_ref, o_ref):
    """Pass 2: y = x*scale + shift; out = where(y>0, y, alpha*y).

    x_ref: (n_blk, C, hw_blk)   p_ref: (3, C, 1) = [scale, shift, alpha]
    """
    x = x_ref[...].astype(jnp.float32)
    p = p_ref[...]                        # tiny, loaded once per block
    scale = p[0:1]                        # (1, C, 1) -> broadcasts over lanes
    shift = p[1:2]
    alpha = p[2:3]
    y = x * scale + shift
    o_ref[...] = jnp.where(y > 0, y, alpha * y).astype(o_ref.dtype)


def br_forward(x_nchw, gamma, beta, alpha):
    """x_nchw: (N, C, H, W) float32. gamma/beta/alpha: (C,) float32."""
    n, c, h, w = x_nchw.shape
    hw = h * w
    x3 = x_nchw.reshape(n, c, hw)         # free reshape, keeps NCHW layout

    n_blk, hw_blk = _choose_tiles(n, c, hw, x3.dtype.itemsize)
    n_tiles = n // n_blk
    hw_tiles = hw // hw_blk

    # ---- Pass 1: per-channel sum / sumsq (partials per N tile) ----
    stats = pl.pallas_call(
        bn_stats_kernel,
        out_shape=jax.ShapeDtypeStruct((n_tiles, 2, c), jnp.float32),
        grid=(n_tiles, hw_tiles),
        in_specs=[
            pl.BlockSpec((n_blk, c, hw_blk), lambda i, j: (i, 0, j)),
        ],
        out_specs=pl.BlockSpec((1, 2, c), lambda i, j: (i, 0, 0)),
        compiler_params=pltpu.CompilerParams(
            dimension_semantics=("parallel", "arbitrary"),
            vmem_limit_bytes=_VMEM_LIMIT_BYTES,
        ),
    )(x3)

    # ---- Tiny C-sized finalize in plain JAX (f32) ----
    tot = jnp.sum(stats, axis=0)                       # (2, C)
    count = float(n * hw)
    mean = tot[0] / count
    var = jnp.maximum(tot[1] / count - mean * mean, 0.0)   # biased variance
    inv_std = jax.lax.rsqrt(var + EPS)
    scale = gamma * inv_std
    shift = beta - mean * scale
    params = jnp.stack([scale, shift, alpha]).reshape(3, c, 1)

    # ---- Pass 2: fused scale/shift + PReLU, fully parallel & pipelined ----
    out3 = pl.pallas_call(
        bn_prelu_apply_kernel,
        out_shape=jax.ShapeDtypeStruct((n, c, hw), x3.dtype),
        grid=(n_tiles, hw_tiles),
        in_specs=[
            pl.BlockSpec((n_blk, c, hw_blk), lambda i, j: (i, 0, j)),
            pl.BlockSpec((3, c, 1), lambda i, j: (0, 0, 0)),
        ],
        out_specs=pl.BlockSpec((n_blk, c, hw_blk), lambda i, j: (i, 0, j)),
        compiler_params=pltpu.CompilerParams(
            dimension_semantics=("parallel", "parallel"),
            vmem_limit_bytes=_VMEM_LIMIT_BYTES,
        ),
    )(x3, params)

    return out3.reshape(n, c, h, w)       # free reshape back to NCHW


def br_reference(x_nchw, gamma, beta, alpha):
    mean = jnp.mean(x_nchw, axis=(0, 2, 3), keepdims=True)
    var = jnp.mean((x_nchw - mean) ** 2, axis=(0, 2, 3), keepdims=True)
    y = (x_nchw - mean) / jnp.sqrt(var + EPS)
    y = y * gamma[None, :, None, None] + beta[None, :, None, None]
    a = alpha[None, :, None, None]
    return jnp.where(y > 0, y, a * y)


if __name__ == "__main__":
    key = jax.random.PRNGKey(0)
    kx, kg, kb, ka = jax.random.split(key, 4)

    N, C, H, W = 2, 4, 16, 16
    x = jax.random.normal(kx, (N, C, H, W), dtype=jnp.float32)

    # PyTorch inits would be gamma=1, beta=0, alpha=0.25; perturb to make the
    # check nontrivial.
    gamma = 1.0 + 0.1 * jax.random.normal(kg, (C,), dtype=jnp.float32)
    beta = 0.1 * jax.random.normal(kb, (C,), dtype=jnp.float32)
    alpha = 0.25 + 0.05 * jax.random.normal(ka, (C,), dtype=jnp.float32)

    out = br_forward(x, gamma, beta, alpha)
    out = jax.block_until_ready(out)

    ref = br_reference(x, gamma, beta, alpha)
    assert out.shape == (N, C, H, W)
    assert jnp.max(jnp.abs(out - ref)) < 1e-4, "mismatch vs reference"

    print("KERNEL_OK")
</pallas_src>

<mosaic_0001>
module attributes {stable_mosaic.version = 11 : i64} {
  func.func @bn_stats_kernel(%arg0: i32, %arg1: i32, %arg2: memref<2x4x256xf32, #tpu.memory_space<vmem>>, %arg3: memref<1x2x4xf32, #tpu.memory_space<vmem>>) attributes {dimension_semantics = [#tpu.dimension_semantics<parallel>, #tpu.dimension_semantics<arbitrary>], iteration_bounds = array<i64: 1, 1>, scalar_prefetch = 0 : i64, scratch_operands = 0 : i64, tpu.core_type = #tpu.core_type<tc>, window_params = [{transform_indices = @transform_0, window_bounds = array<i64: 2, 4, 256>}, {transform_indices = @transform_1, window_bounds = array<i64: 1, 2, 4>}]} {
    %c0_i32 = arith.constant 0 : i32
    %0 = arith.cmpi eq, %arg1, %c0_i32 : i32
    %1 = arith.extui %0 : i1 to i32
    %c0_i32_0 = arith.constant 0 : i32
    %2 = arith.cmpi ne, %1, %c0_i32_0 : i32
    scf.if %2 {
      %cst_15 = arith.constant 0.000000e+00 : f32
      %19 = vector.broadcast %cst_15 : f32 to vector<1x2x4xf32>
      %c0_16 = arith.constant 0 : index
      %c0_17 = arith.constant 0 : index
      %c0_18 = arith.constant 0 : index
      %20 = vector.load %arg3[%c0_16, %c0_17, %c0_18] : memref<1x2x4xf32, #tpu.memory_space<vmem>>, vector<1x2x4xf32>
      tpu.vector_store %arg3[%c0_16, %c0_17, %c0_18], %19 {strides = array<i32>} : memref<1x2x4xf32, #tpu.memory_space<vmem>>, vector<1x2x4xf32>,
    } else {
    }
    %c0 = arith.constant 0 : index
    %c0_1 = arith.constant 0 : index
    %c0_2 = arith.constant 0 : index
    %3 = vector.load %arg2[%c0, %c0_1, %c0_2] : memref<2x4x256xf32, #tpu.memory_space<vmem>>, vector<2x4x256xf32>
    %cst = arith.constant dense<0.000000e+00> : vector<4xf32>
    %4 = vector.multi_reduction <add>, %3, %cst [0, 2] : vector<2x4x256xf32> to vector<4xf32>
    %5 = arith.mulf %3, %3 : vector<2x4x256xf32>
    %cst_3 = arith.constant dense<0.000000e+00> : vector<4xf32>
    %6 = vector.multi_reduction <add>, %5, %cst_3 [0, 2] : vector<2x4x256xf32> to vector<4xf32>
    %c0_4 = arith.constant 0 : index
    %c0_5 = arith.constant 0 : index
    %c0_6 = arith.constant 0 : index
    %7 = vector.load %arg3[%c0_4, %c0_5, %c0_6] : memref<1x2x4xf32, #tpu.memory_space<vmem>>, vector<1x1x4xf32>
    %8 = vector.shape_cast %7 : vector<1x1x4xf32> to vector<4xf32>
    %9 = arith.addf %8, %4 : vector<4xf32>
    %c0_7 = arith.constant 0 : index
    %c0_8 = arith.constant 0 : index
    %c0_9 = arith.constant 0 : index
    %10 = vector.load %arg3[%c0_7, %c0_8, %c0_9] : memref<1x2x4xf32, #tpu.memory_space<vmem>>, vector<1x1x4xf32>
    %11 = vector.shape_cast %10 : vector<1x1x4xf32> to vector<4xf32>
    %12 = vector.shape_cast %9 : vector<4xf32> to vector<1x1x4xf32>
    tpu.vector_store %arg3[%c0_7, %c0_8, %c0_9], %12 {strides = array<i32>} : memref<1x2x4xf32, #tpu.memory_space<vmem>>, vector<1x1x4xf32>,
    %c0_10 = arith.constant 0 : index
    %c1 = arith.constant 1 : index
    %c0_11 = arith.constant 0 : index
    %13 = vector.load %arg3[%c0_10, %c1, %c0_11] : memref<1x2x4xf32, #tpu.memory_space<vmem>>, vector<1x1x4xf32>
    %14 = vector.shape_cast %13 : vector<1x1x4xf32> to vector<4xf32>
    %15 = arith.addf %14, %6 : vector<4xf32>
    %c0_12 = arith.constant 0 : index
    %c1_13 = arith.constant 1 : index
    %c0_14 = arith.constant 0 : index
    %16 = vector.load %arg3[%c0_12, %c1_13, %c0_14] : memref<1x2x4xf32, #tpu.memory_space<vmem>>, vector<1x1x4xf32>
    %17 = vector.shape_cast %16 : vector<1x1x4xf32> to vector<4xf32>
    %18 = vector.shape_cast %15 : vector<4xf32> to vector<1x1x4xf32>
    tpu.vector_store %arg3[%c0_12, %c1_13, %c0_14], %18 {strides = array<i32>} : memref<1x2x4xf32, #tpu.memory_space<vmem>>, vector<1x1x4xf32>,
    return
  }
  func.func @transform_0(%arg0: i32, %arg1: i32) -> (i32, i32, i32) {
    %c0_i32 = arith.constant 0 : i32
    %c0_i32_0 = arith.constant 0 : i32
    return %arg0, %c0_i32, %arg1 : i32, i32, i32
  }
  func.func @transform_1(%arg0: i32, %arg1: i32) -> (i32, i32, i32) {
    %c0_i32 = arith.constant 0 : i32
    %c0_i32_0 = arith.constant 0 : i32
    %c0_i32_1 = arith.constant 0 : i32
    return %arg0, %c0_i32, %c0_i32_0 : i32, i32, i32
  }
}

</mosaic_0001>

<llo_original>
// kernel: tpu_custom_call.1
$region0: #{tpu_custom_call.1}
  #allocation0 [shape = 'u32[]', space=smem, size = 0x4, offset = 0x4, fixed_abs, tag = 'smem constant byte address 0x4 - core index']
  #allocation1 [shape = 'u32[144,128]{1,0:T(1,128)}', space=vmem, size = 0x12000, scoped, tag = 'internal scratch']
  %s0 = inlined_call_operand.hbm [shape: f32[2,4,256], index: 0, kind: input, shape index: {}]
  %s1 = inlined_call_operand.hbm [shape: f32[1,2,4], index: 1, kind: output, shape index: {}]
  %s2 = sld [smem:[#allocation0]]
  $region22: #{tpu_custom_call.1} parent=0
    _
  %s4 = ssub.s32 1, %s2
  %s5 = scalar_select 0, %s4, %s2
  $region1: #{tpu_custom_call.1} parent=0
    #allocation2 [shape = 'u8[8192]{0}', space=vmem, size = 0x2000, scoped, tag = 'input window, operand 0, single buffered']
    #allocation3 [shape = 's32[1]{0}', space=sflag, size = 0x4, scoped, tag = 'scoped memory for tpu_custom_call.1']
    #allocation4 [shape = 's32[1]{0}', space=sflag, size = 0x4, scoped, tag = 'scoped memory for tpu_custom_call.1']
    #allocation5 [shape = 'u8[1024]{0}', space=vmem, size = 0x400, scoped, tag = 'output window, operand 0, single buffered']
    %6 = vsyncpa [#allocation3], 0
    %7 = vsyncpa [#allocation4], 0
    // Predicated region
    $region2: #{tpu_custom_call.1} parent=1 // pred_check
      _
    $region3: #{tpu_custom_call.1} parent=1 // pred_check_branch
      %9 = sbr.rel (0) target = $region5
    $region4: #{tpu_custom_call.1} parent=1 // pred_region
      %s11 = ssub.s32 256, 256
      %12 = vsyncadd [#allocation3], %s11
      %s13 = sshll.u32 [#allocation2], 4
      %s14 = int_to_ptr.vmem [resolvable:$true] %s13
      %19 = dma.hbm_to_vmem [thread:$0]  %s0, 256, %s14, [#allocation3], 128, 128, 8
    $region5: #{tpu_custom_call.1} parent=1 // pred_fallthru
      _
    // Predicated region
    $region6: #{tpu_custom_call.1} parent=1 // pred_check
      _
    $region7: #{tpu_custom_call.1} parent=1 // pred_check_branch
      %21 = sbr.rel (0) target = $region9
    $region8: #{tpu_custom_call.1} parent=1 // pred_region
      %22 = dma.done [#allocation3], 256
    $region9: #{tpu_custom_call.1} parent=1 // pred_fallthru
      _
    %p23 = scmp.eq.s32.totalorder 0, 0
    // Predicated region
    $region10: #{tpu_custom_call.1} parent=1 // pred_check
      %p24 = pneg %p23
    $region11: #{tpu_custom_call.1} parent=1 // pred_check_branch
      %26 = sbr.rel (%p24) target = $region13
    $region12: #{tpu_custom_call.1} parent=1 // pred_region
      %vm27 = vcmask 25600
      %28 = vst.msk [vmem:[#allocation5] sm:$0x3] %vm27, 0.0
    $region13: #{tpu_custom_call.1} parent=1 // pred_fallthru
      _
    %v29 = vld [vmem:[#allocation2] sm:$0xff]
    %v30 = vld [vmem:[#allocation2 + $0x8] sm:$0xff]
    %v33 = vcombine.high %v29, %v29
    %v34 = vcombine.high %v30, %v30
    %vm37 = vcmask 1043456
    %v38 = vsel %vm37, %v29, 0.0
    %v39 = vsel %vm37, %v33, 0.0
    %v40 = vadd.f32 %v38, %v39
    %v41 = vsel %vm37, %v30, 0.0
    %v42 = vadd.f32 %v40, %v41
    %v43 = vsel %vm37, %v34, 0.0
    %v44 = vadd.f32 %v42, %v43
    %45 = vadd.xlane.f32.xlu0 %v44
    %v46 = vpop.xlane.xlu0 %45
    %v47 = vmul.f32 %v29, %v29
    %v48 = vmul.f32 %v30, %v30
    %v51 = vcombine.high %v47, %v47
    %v52 = vcombine.high %v48, %v48
    %v55 = vsel %vm37, %v47, 0.0
    %v56 = vsel %vm37, %v51, 0.0
    %v57 = vadd.f32 %v55, %v56
    %v58 = vsel %vm37, %v48, 0.0
    %v59 = vadd.f32 %v57, %v58
    %v60 = vsel %vm37, %v52, 0.0
    %v61 = vadd.f32 %v59, %v60
    %62 = vadd.xlane.f32.xlu0 %v61
    %v63 = vpop.xlane.xlu0 %62
    %v64 = vld [vmem:[#allocation5] sm:$0x1]
    %v66 = vlaneseq
    %v67 = vand.u32 %v66, 127
    %v68 = vlaneseq
    %v69 = vshrl.u32 %v68, 7
    %v70 = vsub.s32 %v67, %v69
    %v71 = vrot.slane %v46, %v70
    %v73 = vadd.f32 %v64, %v71
    %vm74 = vcmask 24576
    %75 = vst.msk [vmem:[#allocation5] sm:$0x1] %vm74, %v73
    %v76 = vld [vmem:[#allocation5 + $0x1] sm:$0x1]
    %v78 = vlaneseq
    %v79 = vshrl.u32 %v78, 7
    %v80 = vsub.s32 %v67, %v79
    %v81 = vrot.slane %v63, %v80
    %v83 = vadd.f32 %v76, %v81
    %84 = vst.msk [vmem:[#allocation5 + $0x1] sm:$0x1] %vm74, %v83
    // Predicated region
    $region14: #{tpu_custom_call.1} parent=1 // pred_check
      _
    $region15: #{tpu_custom_call.1} parent=1 // pred_check_branch
      %86 = sbr.rel (0) target = $region17
    $region16: #{tpu_custom_call.1} parent=1 // pred_region
      %s88 = ssub.s32 32, 32
      %89 = vsyncadd [#allocation4], %s88
      %s91 = sshll.u32 [#allocation5], 4
      %s92 = int_to_ptr.vmem [resolvable:$true] %s91
      %94 = dma.vmem_to_hbm [thread:$0]  %s92, 32, %s1, [#allocation4]
    $region17: #{tpu_custom_call.1} parent=1 // pred_fallthru
      _
    // Predicated region
    $region18: #{tpu_custom_call.1} parent=1 // pred_check
      _
    $region19: #{tpu_custom_call.1} parent=1 // pred_check_branch
      %96 = sbr.rel (0) target = $region21
    $region20: #{tpu_custom_call.1} parent=1 // pred_region
      %97 = dma.done [#allocation4], 32
    $region21: #{tpu_custom_call.1} parent=1 // pred_fallthru
      _
    %98 = vsyncpa [#allocation3], 1
    %99 = vsyncpa [#allocation4], 1

</llo_original>
